<compile_context>
chip_gen: v7x
topology: tpu7x:2x2x1
jax: 0.10.0
libtpu: 0.0.40
codegen_flags: <defaults>
</compile_context>

<pallas_src>
import math
import functools

import jax
import jax.numpy as jnp
from jax import lax
from jax.experimental import pallas as pl
from jax.experimental.pallas import tpu as pltpu


def _round_up(x, m):
    return (x + m - 1) // m * m


# ---------------------------------------------------------------------------
# Large-vocab path: HBM row-gather with cross-tile double buffering.
# ---------------------------------------------------------------------------
def _embed_gather_kernel(ids_cur_ref, ids_nxt_ref, table_ref, out_ref,
                         buf_ref, sem, *, tn, scale, unroll):
    """Gather `tn` embedding rows from HBM, scale, store one output tile.

    ids_cur_ref: (tn,)         int32 SMEM  -- token ids of this tile
    ids_nxt_ref: (tn,)         int32 SMEM  -- token ids of the next tile (clamped)
    table_ref:   (V, D_pad)    HBM ref (pl.ANY) -- embedding table
    out_ref:     (tn, D_pad)   VMEM output block
    buf_ref:     (2, tn, D_pad) VMEM scratch -- double-buffered gather landing
    sem:         DMA semaphores, shape (2,) -- one per buffer slot
    """
    i = pl.program_id(0)
    n = pl.num_programs(0)
    slot = lax.rem(i, 2)
    nxt_slot = 1 - slot

    def issue(ids_ref, s):
        # Partially-unrolled descriptor-issue loop: lets the scheduler co-issue
        # SMEM id loads, address math and DMA-descriptor pushes.
        def body(r, carry):
            row = ids_ref[r]
            pltpu.make_async_copy(table_ref.at[row],
                                  buf_ref.at[s, r],
                                  sem.at[s]).start()
            return carry
        lax.fori_loop(0, tn, body, 0, unroll=unroll)

    # First tile of the (sequential) grid: its gathers were not prefetched.
    @pl.when(i == 0)
    def _():
        issue(ids_cur_ref, slot)

    # Prefetch the NEXT tile's rows into the other slot BEFORE waiting on the
    # current slot, so the whole next gather overlaps this tile's wait + scale
    # + output writeback.
    @pl.when(i + 1 < n)
    def _():
        issue(ids_nxt_ref, nxt_slot)

    # Single bulk wait: descriptor covers the whole slot, byte count
    # tn * D_pad * itemsize == exact sum of the tn row copies started above.
    # (src/dst are the slot itself so the descriptor is always in-bounds.)
    pltpu.make_async_copy(buf_ref.at[slot], buf_ref.at[slot],
                          sem.at[slot]).wait()

    out_ref[...] = (buf_ref[slot] * scale).astype(out_ref.dtype)


def _gather_path(ids_flat, table, *, tile_tokens):
    (N,) = ids_flat.shape
    V, D = table.shape
    scale = math.sqrt(D)
    itemsize = jnp.dtype(table.dtype).itemsize

    # Lane-dense output blocks: production embed dims are multiples of 128 so
    # this pads nothing there.
    # TODO(synk): for production tables with D % 128 != 0, DMA unpadded (D,)
    # rows into buf[..., :D] instead of materializing a padded table copy.
    D_pad = _round_up(D, 128)
    table_p = table if D_pad == D else jnp.pad(table, ((0, 0), (0, D_pad - D)))

    # Token tile sized so (2 gather slots + Pallas' 2 output buffers) stay well
    # inside the smallest default scoped VMEM (v5e 16 MiB; v7x has 64 MiB
    # physical).
    vmem_budget = 12 * 1024 * 1024
    per_token = 4 * D_pad * itemsize
    max_tn = max(8, (vmem_budget // per_token) // 8 * 8)
    tn = max(8, min(_round_up(tile_tokens, 8), max_tn, _round_up(N, 8)))

    n_pad = _round_up(N, tn)
    num_tiles = n_pad // tn
    # Padded tail slots gather row 0 (valid) and are sliced off afterwards.
    ids_p = jnp.pad(ids_flat.astype(jnp.int32), (0, n_pad - N))

    grid_spec = pltpu.PrefetchScalarGridSpec(
        num_scalar_prefetch=0,
        grid=(num_tiles,),
        in_specs=[
            # Per-tile ids in SMEM (a few KiB) — scales to any B*S, unlike
            # scalar-prefetching the whole id array.
            pl.BlockSpec((tn,), lambda i: (i,),
                         memory_space=pltpu.MemorySpace.SMEM),
            # Next tile's ids (clamped at the last tile) for the prefetch.
            pl.BlockSpec((tn,), lambda i: (jnp.minimum(i + 1, num_tiles - 1),),
                         memory_space=pltpu.MemorySpace.SMEM),
            pl.BlockSpec(memory_space=pl.ANY),   # table stays in HBM
        ],
        out_specs=pl.BlockSpec((tn, D_pad), lambda i: (i, 0)),
        scratch_shapes=[
            pltpu.VMEM((2, tn, D_pad), table.dtype),   # double-buffered gather
            pltpu.SemaphoreType.DMA((2,)),             # one sem per slot
        ],
    )

    out = pl.pallas_call(
        functools.partial(_embed_gather_kernel, tn=tn, scale=scale, unroll=8),
        out_shape=jax.ShapeDtypeStruct((n_pad, D_pad), table.dtype),
        grid_spec=grid_spec,
        compiler_params=pltpu.CompilerParams(
            # The cross-tile double buffer carries scratch + semaphores across
            # grid steps, so this axis must run sequentially.
            # TODO(synk): for v7x 2-TC, split the token range across cores
            # outside the kernel instead of marking this carried axis parallel.
            dimension_semantics=("arbitrary",),
            vmem_limit_bytes=32 * 1024 * 1024,
        ),
    )(ids_p, ids_p, table_p)

    return out[:N, :D]


# ---------------------------------------------------------------------------
# Small-vocab path: table resident in VMEM, one-hot MXU lookup.
# ---------------------------------------------------------------------------
def _embed_resident_kernel(ids_ref, table_ref, out_ref, *, scale):
    tn = out_ref.shape[0]
    V = table_ref.shape[0]
    ids = ids_ref[...]                                       # (tn, 1) int32
    cols = lax.broadcasted_iota(jnp.int32, (tn, V), 1)
    onehot = (cols == ids).astype(table_ref.dtype)           # (tn, V)
    emb = jnp.dot(onehot, table_ref[...],
                  preferred_element_type=jnp.float32)        # (tn, D)
    out_ref[...] = (emb * scale).astype(out_ref.dtype)


def _resident_path(ids_flat, table, *, tile_tokens):
    (N,) = ids_flat.shape
    V, D = table.shape
    scale = math.sqrt(D)

    tn = max(8, min(_round_up(tile_tokens, 8), _round_up(N, 8)))
    n_pad = _round_up(N, tn)
    num_tiles = n_pad // tn
    ids_p = jnp.pad(ids_flat.astype(jnp.int32), (0, n_pad - N)).reshape(n_pad, 1)

    out = pl.pallas_call(
        functools.partial(_embed_resident_kernel, scale=scale),
        out_shape=jax.ShapeDtypeStruct((n_pad, D), table.dtype),
        grid_spec=pltpu.PrefetchScalarGridSpec(
            num_scalar_prefetch=0,
            grid=(num_tiles,),
            in_specs=[
                pl.BlockSpec((tn, 1), lambda i: (i, 0)),   # per-tile ids (VMEM)
                pl.BlockSpec((V, D), lambda i: (0, 0)),    # full table, resident
            ],
            out_specs=pl.BlockSpec((tn, D), lambda i: (i, 0)),
        ),
        compiler_params=pltpu.CompilerParams(
            dimension_semantics=("parallel",),             # no carried state
            vmem_limit_bytes=32 * 1024 * 1024,
        ),
    )(ids_p, table)

    return out[:N]


# ---------------------------------------------------------------------------
# Public wrapper (= TokenEmbedding.forward): table[ids] * sqrt(embed_dim)
# ---------------------------------------------------------------------------
def token_embedding(ids, table, *, tile_tokens=256, method="auto"):
    lead = ids.shape
    V, D = table.shape
    N = 1
    for s in lead:
        N *= s
    ids_flat = ids.reshape(N)

    if method == "auto":
        table_bytes = V * D * jnp.dtype(table.dtype).itemsize
        method = "resident" if (V <= 2048 and table_bytes <= (2 << 20)) else "gather"

    if method == "resident":
        out = _resident_path(ids_flat, table, tile_tokens=tile_tokens)
    else:
        out = _gather_path(ids_flat, table, tile_tokens=tile_tokens)

    return out.reshape(*lead, D)


if __name__ == "__main__":
    vocab_size = 64
    embed_dim = 32
    batch, seq = 2, 8

    key = jax.random.PRNGKey(0)
    k_tab, k_ids = jax.random.split(key)

    # nn.Embedding default init: weight ~ N(0, 1)
    table = jax.random.normal(k_tab, (vocab_size, embed_dim), dtype=jnp.float32)
    ids = jax.random.randint(k_ids, (batch, seq), 0, vocab_size, dtype=jnp.int32)

    ref = jnp.take(table, ids, axis=0) * math.sqrt(embed_dim)

    # Auto dispatch (small table -> VMEM-resident one-hot MXU path).
    out_auto = jax.block_until_ready(token_embedding(ids, table))
    assert out_auto.shape == (batch, seq, embed_dim)
    assert jnp.allclose(out_auto, ref, atol=1e-4, rtol=1e-4)

    # Force the HBM DMA-gather path with a small tile so the cross-tile
    # double buffering / bulk wait runs over multiple grid steps.
    out_gather = jax.block_until_ready(
        token_embedding(ids, table, method="gather", tile_tokens=8))
    assert out_gather.shape == (batch, seq, embed_dim)
    assert jnp.allclose(out_gather, ref, atol=1e-4, rtol=1e-4)

    print("KERNEL_OK")
</pallas_src>

<mosaic_0001>
module attributes {stable_mosaic.version = 11 : i64} {
  func.func @_embed_resident_kernel(%arg0: i32, %arg1: memref<16x1xi32, #tpu.memory_space<vmem>>, %arg2: memref<64x32xf32, #tpu.memory_space<vmem>>, %arg3: memref<16x32xf32, #tpu.memory_space<vmem>>) attributes {dimension_semantics = [#tpu.dimension_semantics<parallel>], iteration_bounds = array<i64: 1>, scalar_prefetch = 0 : i64, scratch_operands = 0 : i64, tpu.core_type = #tpu.core_type<tc>, window_params = [{transform_indices = @transform_0, window_bounds = array<i64: 16, 1>}, {pipeline_mode = #tpu.pipeline_mode<synchronous>, transform_indices = @transform_1, window_bounds = array<i64: 64, 32>}, {transform_indices = @transform_2, window_bounds = array<i64: 16, 32>}]} {
    %c0 = arith.constant 0 : index
    %c0_0 = arith.constant 0 : index
    %0 = vector.load %arg1[%c0, %c0_0] : memref<16x1xi32, #tpu.memory_space<vmem>>, vector<16x1xi32>
    %1 = tpu.iota {dimensions = array<i32: 1>} : vector<16x64xi32>
    %2 = vector.broadcast %0 : vector<16x1xi32> to vector<16x64xi32>
    %3 = arith.cmpi eq, %1, %2 : vector<16x64xi32>
    %4 = arith.extui %3 : vector<16x64xi1> to vector<16x64xi32>
    %5 = arith.sitofp %4 : vector<16x64xi32> to vector<16x64xf32>
    %c0_1 = arith.constant 0 : index
    %c0_2 = arith.constant 0 : index
    %6 = vector.load %arg2[%c0_1, %c0_2] : memref<64x32xf32, #tpu.memory_space<vmem>>, vector<64x32xf32>
    %cst = arith.constant dense<0.000000e+00> : vector<16x32xf32>
    %7 = tpu.matmul %5, %6, %cst {dimension_numbers = #tpu.dot_dimension_numbers<[1], [0], [0], [1], [0, 0, 1, 1], [], []>} : vector<16x64xf32>, vector<64x32xf32>, vector<16x32xf32> -> vector<16x32xf32>
    %cst_3 = arith.constant 5.65685415 : f32
    %8 = vector.broadcast %cst_3 : f32 to vector<16x32xf32>
    %9 = arith.mulf %7, %8 : vector<16x32xf32>
    %c0_4 = arith.constant 0 : index
    %c0_5 = arith.constant 0 : index
    %10 = vector.load %arg3[%c0_4, %c0_5] : memref<16x32xf32, #tpu.memory_space<vmem>>, vector<16x32xf32>
    tpu.vector_store %arg3[%c0_4, %c0_5], %9 {strides = array<i32>} : memref<16x32xf32, #tpu.memory_space<vmem>>, vector<16x32xf32>,
    return
  }
  func.func @transform_0(%arg0: i32) -> (i32, i32) {
    %c0_i32 = arith.constant 0 : i32
    %c0_i32_0 = arith.constant 0 : i32
    return %arg0, %c0_i32 : i32, i32
  }
  func.func @transform_1(%arg0: i32) -> (i32, i32) {
    %c0_i32 = arith.constant 0 : i32
    %c0_i32_0 = arith.constant 0 : i32
    %c0_i32_1 = arith.constant 0 : i32
    return %c0_i32, %c0_i32_0 : i32, i32
  }
  func.func @transform_2(%arg0: i32) -> (i32, i32) {
    %c0_i32 = arith.constant 0 : i32
    %c0_i32_0 = arith.constant 0 : i32
    return %arg0, %c0_i32 : i32, i32
  }
}

</mosaic_0001>

<llo_original>
// kernel: tpu_custom_call.1
$region0: #{tpu_custom_call.1}
  #allocation0 [shape = 'u32[]', space=smem, size = 0x4, offset = 0x4, fixed_abs, tag = 'smem constant byte address 0x4 - core index']
  #allocation1 [shape = 'u32[144,128]{1,0:T(1,128)}', space=vmem, size = 0x12000, scoped, tag = 'internal scratch']
  %s0 = inlined_call_operand.vmem [shape: s32[16,1], index: 0, kind: input, shape index: {}]
  %s1 = inlined_call_operand.vmem [shape: f32[64,32], index: 1, kind: input, shape index: {}]
  %s2 = inlined_call_operand.hbm [shape: f32[16,32], index: 2, kind: output, shape index: {}]
  %s3 = sld [smem:[#allocation0]]
  $region18: #{tpu_custom_call.1} parent=0
    _
  %s5 = ssub.s32 1, %s3
  %s6 = scalar_select 0, %s5, %s3
  $region1: #{tpu_custom_call.1} parent=0
    #allocation2 [shape = 'u8[8192]{0}', space=vmem, size = 0x2000, scoped, tag = 'output window, operand 0, single buffered']
    #allocation3 [shape = 's32[1]{0}', space=sflag, size = 0x4, scoped, tag = 'scoped memory for tpu_custom_call.1']
    %7 = vsyncpa [#allocation3], 0
    // Predicated region
    $region2: #{tpu_custom_call.1} parent=1 // pred_check
      _
    $region3: #{tpu_custom_call.1} parent=1 // pred_check_branch
      %9 = sbr.rel (0) target = $region5
    $region4: #{tpu_custom_call.1} parent=1 // pred_region
      _
    $region5: #{tpu_custom_call.1} parent=1 // pred_fallthru
      _
    // Predicated region
    $region6: #{tpu_custom_call.1} parent=1 // pred_check
      _
    $region7: #{tpu_custom_call.1} parent=1 // pred_check_branch
      %11 = sbr.rel (0) target = $region9
    $region8: #{tpu_custom_call.1} parent=1 // pred_region
      _
    $region9: #{tpu_custom_call.1} parent=1 // pred_fallthru
      _
    %v12 = vld [vmem:[%s0] sm:$0xff]
    %v13 = vld [vmem:[%s0 + $0x8] sm:$0xff]
    %v14 = vlaneseq
    %v15 = vand.u32 %v14, 127
    %16 = vset.pattern.permute.xlu0 0
    %17 = vperm.xlu0 %16, %v12
    %v18 = vpop.permute.xlu0 %17
    %19 = vset.pattern.permute.xlu0 0
    %20 = vperm.xlu0 %19, %v13
    %v21 = vpop.permute.xlu0 %20
    %vm22 = vcmp.eq.s32.totalorder %v15, %v18
    %vm23 = vcmp.eq.s32.totalorder %v15, %v21
    %v24 = vsel %vm22, 1, 0
    %v25 = vsel %vm23, 1, 0
    %v26 = vcvt.s32.f32 %v24
    %v27 = vcvt.s32.f32 %v25
    %v28 = vld [vmem:[%s1] sm:$0xff]
    %v29 = vld [vmem:[%s1 + $0x8] sm:$0xff]
    %v30 = vld [vmem:[%s1 + $0x10] sm:$0xff]
    %v31 = vld [vmem:[%s1 + $0x18] sm:$0xff]
    %v32 = vld [vmem:[%s1 + $0x20] sm:$0xff]
    %v33 = vld [vmem:[%s1 + $0x28] sm:$0xff]
    %v34 = vld [vmem:[%s1 + $0x30] sm:$0xff]
    %v35 = vld [vmem:[%s1 + $0x38] sm:$0xff]
    %vm36 = vcmask 523264
    %v38 = vsel %vm36, %v26, 0
    %v41 = vsel %vm36, %v27, 0
    %43 = vmatprep.subr.mxu0 0.0
    %44 = vmatpush1.msra.mxu0 %v28
    %45 = vmatprep.subr.mxu0 0.0
    %46 = vmatpush1.msra.mxu0 %v29
    %47 = vmatprep.subr.mxu0 0.0
    %48 = vmatpush1.msra.mxu0 %v30
    %49 = vmatprep.subr.mxu0 0.0
    %50 = vmatpush1.msra.mxu0 %v31
    %51 = vmatprep.subr.mxu0 0.0
    %52 = vmatpush1.msra.mxu0 %v32
    %53 = vmatprep.subr.mxu0 0.0
    %54 = vmatpush1.msra.mxu0 %v33
    %55 = vmatprep.subr.mxu0 0.0
    %56 = vmatpush1.msra.mxu0 %v34
    %57 = vmatprep.subr.mxu0 0.0
    %58 = vmatpush1.msra.mxu0 %v35
    %59 = vmatprep.subr.mxu0 0.0
    %60 = vmatpush1.msra.mxu0 0.0
    %61 = vmatprep.subr.mxu0 0.0
    %62 = vmatpush1.msra.mxu0 0.0
    %63 = vmatprep.subr.mxu0 0.0
    %64 = vmatpush1.msra.mxu0 0.0
    %65 = vmatprep.subr.mxu0 0.0
    %66 = vmatpush1.msra.mxu0 0.0
    %67 = vmatprep.subr.mxu0 0.0
    %68 = vmatpush1.msra.mxu0 0.0
    %69 = vmatprep.subr.mxu0 0.0
    %70 = vmatpush1.msra.mxu0 0.0
    %71 = vmatprep.subr.mxu0 0.0
    %72 = vmatpush1.msra.mxu0 0.0
    %73 = vmatprep.subr.mxu0 0.0
    %74 = vmatpush1.msra.mxu0 0.0
    %75 = vmatprep.subr.mxu0 0.0
    %76 = vmatpush1.msra.mxu0 0.0
    %77 = vmatprep.subr.mxu0 0.0
    %78 = vmatpush1.msra.mxu0 0.0
    %79 = vmatprep.subr.mxu0 0.0
    %80 = vmatpush1.msra.mxu0 0.0
    %81 = vmatprep.subr.mxu0 0.0
    %82 = vmatpush1.msra.mxu0 0.0
    %83 = vmatprep.subr.mxu0 0.0
    %84 = vmatpush1.msra.mxu0 0.0
    %85 = vmatprep.subr.mxu0 0.0
    %86 = vmatpush1.msra.mxu0 0.0
    %87 = vmatprep.subr.mxu0 0.0
    %88 = vmatpush1.msra.mxu0 0.0
    %89 = vmatprep.subr.mxu0 0.0
    %90 = vmatpush1.msra.mxu0 0.0
    %91 = vmatprep.subr.mxu0 0.0
    %92 = vmatpush1.msra.mxu0 0.0
    %93 = vmatprep.subr.mxu0 0.0
    %94 = vmatpush1.msra.mxu0 0.0
    %95 = vmatprep.subr.mxu0 0.0
    %96 = vmatpush1.msra.mxu0 0.0
    %97 = vmatprep.subr.mxu0 0.0
    %98 = vmatpush1.msra.mxu0 0.0
    %99 = vmatprep.subr.mxu0 0.0
    %100 = vmatpush1.msra.mxu0 0.0
    %101 = vmatprep.subr.mxu0 0.0
    %102 = vmatpush1.msra.mxu0 0.0
    %103 = vmatprep.subr.mxu0 0.0
    %104 = vmatpush1.msra.mxu0 0.0
    %105 = vmatprep.subr.mxu0 0.0
    %106 = vmatpush1.msra.mxu0 0.0
    %107 = vmatprep.mubr.f32.mxu0 0.0
    %108 = vmatmul.mubr.f32.gmra.mrb[0].mxu0 %v38
    %v109 = vpop.f32.mrb[0].mxu0
    %v110 = vadd.f32 0.0, %v109
    %v111 = vpop.f32.mrb[0].mxu0
    %112 = vmatprep.mubr.f32.mxu0 0.0
    %113 = vmatmul.mubr.f32.gmra.mrb[0].mxu0 %v41
    %v114 = vpop.f32.mrb[0].mxu0
    %v115 = vadd.f32 0.0, %v114
    %v116 = vpop.f32.mrb[0].mxu0
    %117 = vdwg.mxu0
    %v118 = vmul.f32 %v110, 5.656854
    %v119 = vmul.f32 %v115, 5.656854
    %vm120 = vcmask 261120
    %121 = vst.msk [vmem:[#allocation2] sm:$0xff] %vm120, %v118
    %122 = vst.msk [vmem:[#allocation2 + $0x8] sm:$0xff] %vm120, %v119
    // Predicated region
    $region10: #{tpu_custom_call.1} parent=1 // pred_check
      _
    $region11: #{tpu_custom_call.1} parent=1 // pred_check_branch
      %124 = sbr.rel (0) target = $region13
    $region12: #{tpu_custom_call.1} parent=1 // pred_region
      %s126 = ssub.s32 256, 256
      %127 = vsyncadd [#allocation3], %s126
      %s128 = sshll.u32 [#allocation2], 4
      %s129 = int_to_ptr.vmem [resolvable:$true] %s128
      %134 = dma.vmem_to_hbm [thread:$0]  %s129, 256, %s2, [#allocation3], 128, 128, 8
    $region13: #{tpu_custom_call.1} parent=1 // pred_fallthru
      _
    // Predicated region
    $region14: #{tpu_custom_call.1} parent=1 // pred_check
      _
    $region15: #{tpu_custom_call.1} parent=1 // pred_check_branch
      %136 = sbr.rel (0) target = $region17
    $region16: #{tpu_custom_call.1} parent=1 // pred_region
      %137 = dma.done [#allocation3], 256
    $region17: #{tpu_custom_call.1} parent=1 // pred_fallthru
      _
    %138 = vsyncpa [#allocation3], 1

</llo_original>
